<compile_context>
chip_gen: v7x
topology: tpu7x:2x2x1
jax: 0.10.0
libtpu: 0.0.40
codegen_flags: <defaults>
</compile_context>

<pallas_src>
import functools

import jax
import jax.numpy as jnp
from jax.experimental import pallas as pl
from jax.experimental.pallas import tpu as pltpu


def _round_up(x, m):
    return (x + m - 1) // m * m


def _pick_tile(hw_pad, n_batch, *, max_tile=2048, min_steps=8):
    """Largest multiple-of-128 tile that divides hw_pad exactly, capped at
    max_tile, preferring a tile that still leaves >= min_steps total grid
    steps (megacore / pipelining).  Falls back to the largest divisor when
    the problem is too small to ever reach min_steps."""
    m = hw_pad // 128
    cands = [d for d in range(1, min(m, max_tile // 128) + 1) if m % d == 0]
    ok = [d for d in cands if n_batch * (m // d) >= min_steps]
    d = max(ok) if ok else max(cands)
    return d * 128


def _aux_kernel(x_ref, w1_ref, shift_ref, wc_ref, bc_ref, wm_ref, bm_ref,
                wv_ref, bv_ref, cat_ref, mu_ref, var_ref):
    # x_ref: (Cin, T) — channels on sublanes, pixels on lanes (lane-dense).
    x = x_ref[...]
    # 1x1 conv (bias=False) with eval-mode BN scale pre-folded into w1.
    h = jnp.dot(w1_ref[...], x, preferred_element_type=jnp.float32)   # (Cmid, T)
    h = h + shift_ref[...]                                            # BN shift (f32)
    h = jnp.where(h > 0, h, 0.2 * h)                                  # LeakyReLU(0.2)
    hc = h.astype(wc_ref.dtype)                                       # match head dtype
    # Three small head matmuls storing DIRECTLY into their outputs: no
    # sublane-unaligned row slicing of a fused (ctot, T) intermediate.
    cat_ref[...] = (jnp.dot(wc_ref[...], hc, preferred_element_type=jnp.float32)
                    + bc_ref[...]).astype(cat_ref.dtype)
    mu_ref[...] = (jnp.dot(wm_ref[...], hc, preferred_element_type=jnp.float32)
                   + bm_ref[...]).astype(mu_ref.dtype)
    var_ref[...] = jnp.exp(jnp.dot(wv_ref[...], hc, preferred_element_type=jnp.float32)
                           + bv_ref[...]).astype(var_ref.dtype)       # exp -> EUP


def aux_distribution_forward(x_nchw, params, *, max_tile=2048, min_grid_steps=8,
                             compute_dtype=jnp.float32):
    """x_nchw: (N, cnum*16, H, W) float32.  Returns (cat, mu, var), squeezed."""
    N, Cin, H, W = x_nchw.shape
    (w1, gamma, beta, rmean, rvar, wc, bc, wm, bm, wv, bv) = params
    eps = 1e-5
    Cmid = w1.shape[0]
    ndc = wc.shape[0]
    ncc = wm.shape[0]

    # Fold eval-mode BatchNorm scale into the first conv weight (trace time).
    bn_scale = gamma / jnp.sqrt(rvar + eps)
    w1s = (w1 * bn_scale[:, None]).astype(compute_dtype)         # (Cmid, Cin)
    shift = (beta - rmean * bn_scale)[:, None].astype(jnp.float32)  # (Cmid, 1)

    wc2 = wc.astype(compute_dtype)
    wm2 = wm.astype(compute_dtype)
    wv2 = wv.astype(compute_dtype)
    bc2 = bc[:, None].astype(jnp.float32)
    bm2 = bm[:, None].astype(jnp.float32)
    bv2 = bv[:, None].astype(jnp.float32)

    # NCHW stays NCHW: flatten spatial onto the lane axis.  Pad ONLY to the
    # next multiple of 128 (no-op when HW % 128 == 0); the tile is then chosen
    # as an exact divisor, so no extra full-input padding pass is needed.
    HW = H * W
    HW_pad = _round_up(HW, 128)
    tile = _pick_tile(HW_pad, N, max_tile=max_tile, min_steps=min_grid_steps)
    x3d = x_nchw.reshape(N, Cin, HW)
    if HW_pad != HW:
        x3d = jnp.pad(x3d, ((0, 0), (0, 0), (0, HW_pad - HW)))
    x3d = x3d.astype(compute_dtype)

    grid = (N, HW_pad // tile)

    itemsize = jnp.dtype(compute_dtype).itemsize
    ctot = ndc + 2 * ncc
    cost = pl.CostEstimate(
        flops=2 * N * HW_pad * (Cmid * Cin + ctot * Cmid),
        transcendentals=N * HW_pad * ncc,
        bytes_accessed=(N * Cin * HW_pad * itemsize            # input
                        + N * ctot * HW_pad * 4                # three f32 outputs
                        + (Cmid * Cin + ctot * Cmid) * itemsize
                        + (Cmid + ctot) * 4),
    )

    cat3d, mu3d, var3d = pl.pallas_call(
        _aux_kernel,
        grid=grid,
        in_specs=[
            pl.BlockSpec((None, Cin, tile), lambda n, t: (n, 0, t)),   # x tile
            pl.BlockSpec((Cmid, Cin), lambda n, t: (0, 0)),            # w1 (BN-folded)
            pl.BlockSpec((Cmid, 1), lambda n, t: (0, 0)),              # BN shift
            pl.BlockSpec((ndc, Cmid), lambda n, t: (0, 0)),            # cat head W
            pl.BlockSpec((ndc, 1), lambda n, t: (0, 0)),               # cat head b
            pl.BlockSpec((ncc, Cmid), lambda n, t: (0, 0)),            # mu head W
            pl.BlockSpec((ncc, 1), lambda n, t: (0, 0)),               # mu head b
            pl.BlockSpec((ncc, Cmid), lambda n, t: (0, 0)),            # var head W
            pl.BlockSpec((ncc, 1), lambda n, t: (0, 0)),               # var head b
        ],
        out_specs=(
            pl.BlockSpec((None, ndc, tile), lambda n, t: (n, 0, t)),
            pl.BlockSpec((None, ncc, tile), lambda n, t: (n, 0, t)),
            pl.BlockSpec((None, ncc, tile), lambda n, t: (n, 0, t)),
        ),
        out_shape=(
            jax.ShapeDtypeStruct((N, ndc, HW_pad), jnp.float32),
            jax.ShapeDtypeStruct((N, ncc, HW_pad), jnp.float32),
            jax.ShapeDtypeStruct((N, ncc, HW_pad), jnp.float32),
        ),
        compiler_params=pltpu.CompilerParams(
            dimension_semantics=("parallel", "parallel"),
        ),
        cost_estimate=cost,
    )(x3d, w1s, shift, wc2, bc2, wm2, bm2, wv2, bv2)

    def finish(y, c):
        y = y[:, :, :HW].reshape(N, c, H, W)
        return jnp.squeeze(y)   # match torch .squeeze()

    return finish(cat3d, ndc), finish(mu3d, ncc), finish(var3d, ncc)


def make_params(key, cnum, ndc, ncc):
    """PyTorch-layout parameters: conv weights are (Cout, Cin)."""
    cin = cnum * 16
    cmid = cnum * 2
    ks = jax.random.split(key, 10)
    w1 = jax.random.normal(ks[0], (cmid, cin), jnp.float32) * 0.05
    gamma = 1.0 + 0.1 * jax.random.normal(ks[1], (cmid,), jnp.float32)
    beta = 0.1 * jax.random.normal(ks[2], (cmid,), jnp.float32)
    rmean = 0.1 * jax.random.normal(ks[3], (cmid,), jnp.float32)
    rvar = 1.0 + 0.1 * jax.random.uniform(ks[4], (cmid,), jnp.float32)
    wc = jax.random.normal(ks[5], (ndc, cmid), jnp.float32) * 0.1
    bc = 0.05 * jax.random.normal(ks[6], (ndc,), jnp.float32)
    wm = jax.random.normal(ks[7], (ncc, cmid), jnp.float32) * 0.1
    bm = 0.05 * jax.random.normal(ks[8], (ncc,), jnp.float32)
    wv = jax.random.normal(ks[9], (ncc, cmid), jnp.float32) * 0.1
    bv = jnp.zeros((ncc,), jnp.float32)
    return (w1, gamma, beta, rmean, rvar, wc, bc, wm, bm, wv, bv)


def _reference(x_nchw, params):
    """Plain-JAX reference (eval-mode BN) for verification."""
    (w1, gamma, beta, rmean, rvar, wc, bc, wm, bm, wv, bv) = params
    eps = 1e-5
    scale = gamma / jnp.sqrt(rvar + eps)
    h = jnp.einsum('oc,nchw->nohw', w1, x_nchw)
    h = h * scale[None, :, None, None] + (beta - rmean * scale)[None, :, None, None]
    h = jnp.where(h > 0, h, 0.2 * h)

    def head(wt, b):
        return jnp.einsum('oc,nchw->nohw', wt, h) + b[None, :, None, None]

    cat = head(wc, bc)
    mu = head(wm, bm)
    var = jnp.exp(head(wv, bv))
    return jnp.squeeze(cat), jnp.squeeze(mu), jnp.squeeze(var)


if __name__ == "__main__":
    cnum, ndc, ncc = 4, 10, 4          # Cin = 64, Cmid = 8
    N, H, W = 2, 16, 16                # HW = 256 pixels -> one 256-wide tile per n

    key = jax.random.PRNGKey(0)
    k_x, k_p = jax.random.split(key)
    x = jax.random.normal(k_x, (N, cnum * 16, H, W), jnp.float32)
    params = make_params(k_p, cnum, ndc, ncc)

    fwd = jax.jit(functools.partial(aux_distribution_forward))
    cat, mu, var = fwd(x, params)
    jax.block_until_ready((cat, mu, var))

    cat_r, mu_r, var_r = _reference(x, params)
    assert cat.shape == (N, ndc, H, W), cat.shape
    assert mu.shape == (N, ncc, H, W), mu.shape
    assert var.shape == (N, ncc, H, W), var.shape
    assert jnp.allclose(cat, cat_r, atol=1e-4, rtol=1e-4)
    assert jnp.allclose(mu, mu_r, atol=1e-4, rtol=1e-4)
    assert jnp.allclose(var, var_r, atol=1e-4, rtol=1e-4)

    print("KERNEL_OK")
</pallas_src>

<mosaic_0001>
module attributes {stable_mosaic.version = 11 : i64} {
  func.func @_aux_kernel(%arg0: i32, %arg1: i32, %arg2: memref<1x64x256xf32, #tpu.memory_space<vmem>>, %arg3: memref<8x64xf32, #tpu.memory_space<vmem>>, %arg4: memref<8x1xf32, #tpu.memory_space<vmem>>, %arg5: memref<10x8xf32, #tpu.memory_space<vmem>>, %arg6: memref<10x1xf32, #tpu.memory_space<vmem>>, %arg7: memref<4x8xf32, #tpu.memory_space<vmem>>, %arg8: memref<4x1xf32, #tpu.memory_space<vmem>>, %arg9: memref<4x8xf32, #tpu.memory_space<vmem>>, %arg10: memref<4x1xf32, #tpu.memory_space<vmem>>, %arg11: memref<1x10x256xf32, #tpu.memory_space<vmem>>, %arg12: memref<1x4x256xf32, #tpu.memory_space<vmem>>, %arg13: memref<1x4x256xf32, #tpu.memory_space<vmem>>) attributes {dimension_semantics = [#tpu.dimension_semantics<parallel>, #tpu.dimension_semantics<parallel>], iteration_bounds = array<i64: 2, 1>, scalar_prefetch = 0 : i64, scratch_operands = 0 : i64, tpu.core_type = #tpu.core_type<tc>, window_params = [{transform_indices = @transform_0, window_bounds = array<i64: 1, 64, 256>}, {pipeline_mode = #tpu.pipeline_mode<synchronous>, transform_indices = @transform_1, window_bounds = array<i64: 8, 64>}, {pipeline_mode = #tpu.pipeline_mode<synchronous>, transform_indices = @transform_2, window_bounds = array<i64: 8, 1>}, {pipeline_mode = #tpu.pipeline_mode<synchronous>, transform_indices = @transform_3, window_bounds = array<i64: 10, 8>}, {pipeline_mode = #tpu.pipeline_mode<synchronous>, transform_indices = @transform_4, window_bounds = array<i64: 10, 1>}, {pipeline_mode = #tpu.pipeline_mode<synchronous>, transform_indices = @transform_5, window_bounds = array<i64: 4, 8>}, {pipeline_mode = #tpu.pipeline_mode<synchronous>, transform_indices = @transform_6, window_bounds = array<i64: 4, 1>}, {pipeline_mode = #tpu.pipeline_mode<synchronous>, transform_indices = @transform_7, window_bounds = array<i64: 4, 8>}, {pipeline_mode = #tpu.pipeline_mode<synchronous>, transform_indices = @transform_8, window_bounds = array<i64: 4, 1>}, {transform_indices = @transform_9, window_bounds = array<i64: 1, 10, 256>}, {transform_indices = @transform_10, window_bounds = array<i64: 1, 4, 256>}, {transform_indices = @transform_11, window_bounds = array<i64: 1, 4, 256>}]} {
    %c0 = arith.constant 0 : index
    %c0_0 = arith.constant 0 : index
    %c0_1 = arith.constant 0 : index
    %0 = vector.load %arg2[%c0, %c0_0, %c0_1] : memref<1x64x256xf32, #tpu.memory_space<vmem>>, vector<1x64x256xf32>
    %1 = vector.shape_cast %0 : vector<1x64x256xf32> to vector<64x256xf32>
    %c0_2 = arith.constant 0 : index
    %c0_3 = arith.constant 0 : index
    %2 = vector.load %arg3[%c0_2, %c0_3] : memref<8x64xf32, #tpu.memory_space<vmem>>, vector<8x64xf32>
    %cst = arith.constant dense<0.000000e+00> : vector<8x256xf32>
    %3 = tpu.matmul %2, %1, %cst {dimension_numbers = #tpu.dot_dimension_numbers<[1], [0], [0], [1], [0, 0, 1, 1], [], []>} : vector<8x64xf32>, vector<64x256xf32>, vector<8x256xf32> -> vector<8x256xf32>
    %c0_4 = arith.constant 0 : index
    %c0_5 = arith.constant 0 : index
    %4 = vector.load %arg4[%c0_4, %c0_5] : memref<8x1xf32, #tpu.memory_space<vmem>>, vector<8x1xf32>
    %5 = vector.broadcast %4 : vector<8x1xf32> to vector<8x256xf32>
    %6 = arith.addf %3, %5 : vector<8x256xf32>
    %cst_6 = arith.constant 0.000000e+00 : f32
    %7 = vector.broadcast %cst_6 : f32 to vector<8x256xf32>
    %8 = arith.cmpf ogt, %6, %7 : vector<8x256xf32>
    %cst_7 = arith.constant 2.000000e-01 : f32
    %9 = vector.broadcast %cst_7 : f32 to vector<8x256xf32>
    %10 = arith.mulf %9, %6 : vector<8x256xf32>
    %11 = arith.select %8, %6, %10 : vector<8x256xi1>, vector<8x256xf32>
    %c0_8 = arith.constant 0 : index
    %c0_9 = arith.constant 0 : index
    %12 = vector.load %arg5[%c0_8, %c0_9] : memref<10x8xf32, #tpu.memory_space<vmem>>, vector<10x8xf32>
    %cst_10 = arith.constant dense<0.000000e+00> : vector<10x256xf32>
    %13 = tpu.matmul %12, %11, %cst_10 {dimension_numbers = #tpu.dot_dimension_numbers<[1], [0], [0], [1], [0, 0, 1, 1], [], []>} : vector<10x8xf32>, vector<8x256xf32>, vector<10x256xf32> -> vector<10x256xf32>
    %c0_11 = arith.constant 0 : index
    %c0_12 = arith.constant 0 : index
    %14 = vector.load %arg6[%c0_11, %c0_12] : memref<10x1xf32, #tpu.memory_space<vmem>>, vector<10x1xf32>
    %15 = vector.broadcast %14 : vector<10x1xf32> to vector<10x256xf32>
    %16 = arith.addf %13, %15 : vector<10x256xf32>
    %c0_13 = arith.constant 0 : index
    %c0_14 = arith.constant 0 : index
    %c0_15 = arith.constant 0 : index
    %17 = vector.load %arg11[%c0_13, %c0_14, %c0_15] : memref<1x10x256xf32, #tpu.memory_space<vmem>>, vector<1x10x256xf32>
    %18 = vector.shape_cast %17 : vector<1x10x256xf32> to vector<10x256xf32>
    %19 = vector.shape_cast %16 : vector<10x256xf32> to vector<1x10x256xf32>
    tpu.vector_store %arg11[%c0_13, %c0_14, %c0_15], %19 {strides = array<i32>} : memref<1x10x256xf32, #tpu.memory_space<vmem>>, vector<1x10x256xf32>,
    %c0_16 = arith.constant 0 : index
    %c0_17 = arith.constant 0 : index
    %20 = vector.load %arg7[%c0_16, %c0_17] : memref<4x8xf32, #tpu.memory_space<vmem>>, vector<4x8xf32>
    %cst_18 = arith.constant dense<0.000000e+00> : vector<4x256xf32>
    %21 = tpu.matmul %20, %11, %cst_18 {dimension_numbers = #tpu.dot_dimension_numbers<[1], [0], [0], [1], [0, 0, 1, 1], [], []>} : vector<4x8xf32>, vector<8x256xf32>, vector<4x256xf32> -> vector<4x256xf32>
    %c0_19 = arith.constant 0 : index
    %c0_20 = arith.constant 0 : index
    %22 = vector.load %arg8[%c0_19, %c0_20] : memref<4x1xf32, #tpu.memory_space<vmem>>, vector<4x1xf32>
    %23 = vector.broadcast %22 : vector<4x1xf32> to vector<4x256xf32>
    %24 = arith.addf %21, %23 : vector<4x256xf32>
    %c0_21 = arith.constant 0 : index
    %c0_22 = arith.constant 0 : index
    %c0_23 = arith.constant 0 : index
    %25 = vector.load %arg12[%c0_21, %c0_22, %c0_23] : memref<1x4x256xf32, #tpu.memory_space<vmem>>, vector<1x4x256xf32>
    %26 = vector.shape_cast %25 : vector<1x4x256xf32> to vector<4x256xf32>
    %27 = vector.shape_cast %24 : vector<4x256xf32> to vector<1x4x256xf32>
    tpu.vector_store %arg12[%c0_21, %c0_22, %c0_23], %27 {strides = array<i32>} : memref<1x4x256xf32, #tpu.memory_space<vmem>>, vector<1x4x256xf32>,
    %c0_24 = arith.constant 0 : index
    %c0_25 = arith.constant 0 : index
    %28 = vector.load %arg9[%c0_24, %c0_25] : memref<4x8xf32, #tpu.memory_space<vmem>>, vector<4x8xf32>
    %cst_26 = arith.constant dense<0.000000e+00> : vector<4x256xf32>
    %29 = tpu.matmul %28, %11, %cst_26 {dimension_numbers = #tpu.dot_dimension_numbers<[1], [0], [0], [1], [0, 0, 1, 1], [], []>} : vector<4x8xf32>, vector<8x256xf32>, vector<4x256xf32> -> vector<4x256xf32>
    %c0_27 = arith.constant 0 : index
    %c0_28 = arith.constant 0 : index
    %30 = vector.load %arg10[%c0_27, %c0_28] : memref<4x1xf32, #tpu.memory_space<vmem>>, vector<4x1xf32>
    %31 = vector.broadcast %30 : vector<4x1xf32> to vector<4x256xf32>
    %32 = arith.addf %29, %31 : vector<4x256xf32>
    %33 = math.exp %32 : vector<4x256xf32>
    %c0_29 = arith.constant 0 : index
    %c0_30 = arith.constant 0 : index
    %c0_31 = arith.constant 0 : index
    %34 = vector.load %arg13[%c0_29, %c0_30, %c0_31] : memref<1x4x256xf32, #tpu.memory_space<vmem>>, vector<1x4x256xf32>
    %35 = vector.shape_cast %34 : vector<1x4x256xf32> to vector<4x256xf32>
    %36 = vector.shape_cast %33 : vector<4x256xf32> to vector<1x4x256xf32>
    tpu.vector_store %arg13[%c0_29, %c0_30, %c0_31], %36 {strides = array<i32>} : memref<1x4x256xf32, #tpu.memory_space<vmem>>, vector<1x4x256xf32>,
    return
  }
  func.func @transform_0(%arg0: i32, %arg1: i32) -> (i32, i32, i32) {
    %c0_i32 = arith.constant 0 : i32
    %c0_i32_0 = arith.constant 0 : i32
    return %arg0, %c0_i32, %arg1 : i32, i32, i32
  }
  func.func @transform_1(%arg0: i32, %arg1: i32) -> (i32, i32) {
    %c0_i32 = arith.constant 0 : i32
    %c0_i32_0 = arith.constant 0 : i32
    %c0_i32_1 = arith.constant 0 : i32
    return %c0_i32, %c0_i32_0 : i32, i32
  }
  func.func @transform_2(%arg0: i32, %arg1: i32) -> (i32, i32) {
    %c0_i32 = arith.constant 0 : i32
    %c0_i32_0 = arith.constant 0 : i32
    %c0_i32_1 = arith.constant 0 : i32
    return %c0_i32, %c0_i32_0 : i32, i32
  }
  func.func @transform_3(%arg0: i32, %arg1: i32) -> (i32, i32) {
    %c0_i32 = arith.constant 0 : i32
    %c0_i32_0 = arith.constant 0 : i32
    %c0_i32_1 = arith.constant 0 : i32
    return %c0_i32, %c0_i32_0 : i32, i32
  }
  func.func @transform_4(%arg0: i32, %arg1: i32) -> (i32, i32) {
    %c0_i32 = arith.constant 0 : i32
    %c0_i32_0 = arith.constant 0 : i32
    %c0_i32_1 = arith.constant 0 : i32
    return %c0_i32, %c0_i32_0 : i32, i32
  }
  func.func @transform_5(%arg0: i32, %arg1: i32) -> (i32, i32) {
    %c0_i32 = arith.constant 0 : i32
    %c0_i32_0 = arith.constant 0 : i32
    %c0_i32_1 = arith.constant 0 : i32
    return %c0_i32, %c0_i32_0 : i32, i32
  }
  func.func @transform_6(%arg0: i32, %arg1: i32) -> (i32, i32) {
    %c0_i32 = arith.constant 0 : i32
    %c0_i32_0 = arith.constant 0 : i32
    %c0_i32_1 = arith.constant 0 : i32
    return %c0_i32, %c0_i32_0 : i32, i32
  }
  func.func @transform_7(%arg0: i32, %arg1: i32) -> (i32, i32) {
    %c0_i32 = arith.constant 0 : i32
    %c0_i32_0 = arith.constant 0 : i32
    %c0_i32_1 = arith.constant 0 : i32
    return %c0_i32, %c0_i32_0 : i32, i32
  }
  func.func @transform_8(%arg0: i32, %arg1: i32) -> (i32, i32) {
    %c0_i32 = arith.constant 0 : i32
    %c0_i32_0 = arith.constant 0 : i32
    %c0_i32_1 = arith.constant 0 : i32
    return %c0_i32, %c0_i32_0 : i32, i32
  }
  func.func @transform_9(%arg0: i32, %arg1: i32) -> (i32, i32, i32) {
    %c0_i32 = arith.constant 0 : i32
    %c0_i32_0 = arith.constant 0 : i32
    return %arg0, %c0_i32, %arg1 : i32, i32, i32
  }
  func.func @transform_10(%arg0: i32, %arg1: i32) -> (i32, i32, i32) {
    %c0_i32 = arith.constant 0 : i32
    %c0_i32_0 = arith.constant 0 : i32
    return %arg0, %c0_i32, %arg1 : i32, i32, i32
  }
  func.func @transform_11(%arg0: i32, %arg1: i32) -> (i32, i32, i32) {
    %c0_i32 = arith.constant 0 : i32
    %c0_i32_0 = arith.constant 0 : i32
    return %arg0, %c0_i32, %arg1 : i32, i32, i32
  }
}

</mosaic_0001>

<llo_original>
// kernel: aux_distribution_forward.1
$region0: #{aux_distribution_forward.1}
  #allocation0 [shape = 'u32[]', space=smem, size = 0x4, offset = 0x4, fixed_abs, tag = 'smem constant byte address 0x4 - core index']
  #allocation1 [shape = 'u32[144,128]{1,0:T(1,128)}', space=vmem, size = 0x12000, scoped, tag = 'internal scratch']
  %s0 = inlined_call_operand.vmem [shape: f32[2,64,256], index: 0, kind: input, shape index: {}]
  %s1 = inlined_call_operand.vmem [shape: f32[8,64], index: 1, kind: input, shape index: {}]
  %s2 = inlined_call_operand.vmem [shape: f32[8,1], index: 2, kind: input, shape index: {}]
  %s3 = inlined_call_operand.vmem [shape: f32[10,8], index: 3, kind: input, shape index: {}]
  %s4 = inlined_call_operand.vmem [shape: f32[10,1], index: 4, kind: input, shape index: {}]
  %s5 = inlined_call_operand.vmem [shape: f32[4,8], index: 5, kind: input, shape index: {}]
  %s6 = inlined_call_operand.vmem [shape: f32[4,1], index: 6, kind: input, shape index: {}]
  %s7 = inlined_call_operand.vmem [shape: f32[4,8], index: 7, kind: input, shape index: {}]
  %s8 = inlined_call_operand.vmem [shape: f32[4,1], index: 8, kind: input, shape index: {}]
  %s9 = inlined_call_operand.vmem [shape: f32[2,10,256], index: 9, kind: output, shape index: {0}]
  %s10 = inlined_call_operand.vmem [shape: f32[2,4,256], index: 10, kind: output, shape index: {1}]
  %s11 = inlined_call_operand.vmem [shape: f32[2,4,256], index: 11, kind: output, shape index: {2}]
  %12 = xla_tuple %s9, %s10, %s11
  %s13 = sld [smem:[#allocation0]]
  $region85: #{aux_distribution_forward.1} parent=0
    _
  %s15 = ssub.s32 1, %s13
  %s16 = scalar_select 0, %s15, %s13
  loop: start=0, step=1, limit=4
  $region2: #{aux_distribution_forward.1} parent=0 // loop_pre_header
    _
  $region3: #{aux_distribution_forward.1} parent=0 // loop_header
    %s18 = sphi 0, %s22
    %p19 = scmp.ge.s32.totalorder %s18, 4
    %s25 = sphi 0, %s37
    %s26 = sphi 0, %s33
    %s27 = sphi 0, %s25
    %s28 = sphi 0, %s26
    %s29 = sphi 0, %s27
    %s30 = sphi 0, %s28
    %s42 = sphi 0, %s44
    %s45 = sphi 0, %s42
    %s46 = sphi 0, %s45
    %s62 = sphi 0, %s46
    %s66 = sphi 0, %s66
    %s68 = sphi 0, %s66
    %s69 = sphi 0, %s68
    %s83 = sphi 0, %s69
    %s87 = sphi 0, %s87
    %s89 = sphi 0, %s87
    %s90 = sphi 0, %s89
    %s104 = sphi 0, %s90
    %s108 = sphi 0, %s108
    %s110 = sphi 0, %s108
    %s111 = sphi 0, %s110
    %s125 = sphi 0, %s111
    %s129 = sphi 0, %s129
    %s131 = sphi 0, %s129
    %s132 = sphi 0, %s131
    %s146 = sphi 0, %s132
    %s150 = sphi 0, %s150
    %s152 = sphi 0, %s150
    %s153 = sphi 0, %s152
    %s167 = sphi 0, %s153
    %s171 = sphi 0, %s171
    %s173 = sphi 0, %s171
    %s174 = sphi 0, %s173
    %s188 = sphi 0, %s174
    %s192 = sphi 0, %s192
    %s194 = sphi 0, %s192
    %s195 = sphi 0, %s194
    %s209 = sphi 0, %s195
    %s213 = sphi 0, %s213
    %s215 = sphi 0, %s213
    %s216 = sphi 0, %s215
    %s230 = sphi 0, %s216
    %s238 = sphi 0, %s240
    %s241 = sphi 0, %s238
    %s242 = sphi 0, %s241
    %s258 = sphi 0, %s242
    %s266 = sphi 0, %s268
    %s269 = sphi 0, %s266
    %s270 = sphi 0, %s269
    %s286 = sphi 0, %s270
    %s294 = sphi 0, %s296
    %s297 = sphi 0, %s294
    %s298 = sphi 0, %s297
    %s314 = sphi 0, %s298
  $region4: #{aux_distribution_forward.1} parent=0 // loop_header_branch
    %21 = sbr.rel (%p19) target = $region8
  $region5: #{aux_distribution_forward.1} parent=0 // loop_body
    %s23 = ssub.s32 %s18, 1
    %s24 = ssub.s32 %s18, 2
    %s31 = sadd.s32 1, %s26
    %p32 = scmp.ge.s32.totalorder %s31, 1
    %s33 = scalar_select %p32, 0, %s31
    %s34 = sadd.s32 1, %s25
    %s35 = scalar_select %p32, %s34, %s25
    %p36 = scmp.ge.s32.totalorder %s35, 2
    %s37 = scalar_select %p36, 0, %s35
    %s38 = ssub.s32 %s25, %s37
    %s39 = ssub.s32 %s26, %s33
    %s40 = sor.u32 %s38, %s39
    %p41 = scmp.eq.s32.totalorder %s40, 0
    %s43 = sadd.s32 %s42, 1
    %s44 = scalar_select %p41, %s42, %s43
    %p47 = pneg %p41
    %p48 = scmp.eq.s32.totalorder %s18, 1
    %p49 = por %p47, %p48
    %p50 = scmp.ne.s32.totalorder %s42, %s45
    %p51 = scmp.eq.s32.totalorder %s18, 0
    %p52 = por %p50, %p51
    %p53 = scmp.ne.s32.totalorder %s42, %s45
    %p54 = scmp.eq.s32.totalorder %s23, 1
    %p55 = por %p53, %p54
    %p56 = scmp.ne.s32.totalorder %s45, %s46
    %p57 = scmp.eq.s32.totalorder %s23, 0
    %p58 = por %p56, %p57
    %p59 = scmp.ne.s32.totalorder %s45, %s46
    %p60 = scmp.eq.s32.totalorder %s24, 1
    %p61 = por %p59, %p60
    %p63 = scmp.ne.s32.totalorder %s46, %s62
    %p64 = scmp.eq.s32.totalorder %s24, 0
    %p65 = por %p63, %p64
    %s67 = sadd.s32 %s66, 1
    %p70 = scmp.eq.s32.totalorder %s18, 1
    %p71 = scmp.ne.s32.totalorder %s66, %s68
    %p72 = scmp.eq.s32.totalorder %s18, 0
    %p73 = por %p71, %p72
    %p74 = scmp.ne.s32.totalorder %s66, %s68
    %p75 = scmp.eq.s32.totalorder %s23, 1
    %p76 = por %p74, %p75
    %p77 = scmp.ne.s32.totalorder %s68, %s69
    %p78 = scmp.eq.s32.totalorder %s23, 0
    %p79 = por %p77, %p78
    %p80 = scmp.ne.s32.totalorder %s68, %s69
    %p81 = scmp.eq.s32.totalorder %s24, 1
    %p82 = por %p80, %p81
    %p84 = scmp.ne.s32.totalorder %s69, %s83
    %p85 = scmp.eq.s32.totalorder %s24, 0
    %p86 = por %p84, %p85
    %s88 = sadd.s32 %s87, 1
    %p91 = scmp.eq.s32.totalorder %s18, 1
    %p92 = scmp.ne.s32.totalorder %s87, %s89
    %p93 = scmp.eq.s32.totalorder %s18, 0
    %p94 = por %p92, %p93
    %p95 = scmp.ne.s32.totalorder %s87, %s89
    %p96 = scmp.eq.s32.totalorder %s23, 1
    %p97 = por %p95, %p96
    %p98 = scmp.ne.s32.totalorder %s89, %s90
    %p99 = scmp.eq.s32.totalorder %s23, 0
    %p100 = por %p98, %p99
    %p101 = scmp.ne.s32.totalorder %s89, %s90
    %p102 = scmp.eq.s32.totalorder %s24, 1
    %p103 = por %p101, %p102
    %p105 = scmp.ne.s32.totalorder %s90, %s104
    %p106 = scmp.eq.s32.totalorder %s24, 0
    %p107 = por %p105, %p106
    %s109 = sadd.s32 %s108, 1
    %p112 = scmp.eq.s32.totalorder %s18, 1
    %p113 = scmp.ne.s32.totalorder %s108, %s110
    %p114 = scmp.eq.s32.totalorder %s18, 0
    %p115 = por %p113, %p114
    %p116 = scmp.ne.s32.totalorder %s108, %s110
    %p117 = scmp.eq.s32.totalorder %s23, 1
    %p118 = por %p116, %p117
    %p119 = scmp.ne.s32.totalorder %s110, %s111
    %p120 = scmp.eq.s32.totalorder %s23, 0
    %p121 = por %p119, %p120
    %p122 = scmp.ne.s32.totalorder %s110, %s111
    %p123 = scmp.eq.s32.totalorder %s24, 1
    %p124 = por %p122, %p123
    %p126 = scmp.ne.s32.totalorder %s111, %s125
    %p127 = scmp.eq.s32.totalorder %s24, 0
    %p128 = por %p126, %p127
    %s130 = sadd.s32 %s129, 1
    %p133 = scmp.eq.s32.totalorder %s18, 1
    %p134 = scmp.ne.s32.totalorder %s129, %s131
    %p135 = scmp.eq.s32.totalorder %s18, 0
    %p136 = por %p134, %p135
    %p137 = scmp.ne.s32.totalorder %s129, %s131
    %p138 = scmp.eq.s32.totalorder %s23, 1
    %p139 = por %p137, %p138
    %p140 = scmp.ne.s32.totalorder %s131, %s132
    %p141 = scmp.eq.s32.totalorder %s23, 0
    %p142 = por %p140, %p141
    %p143 = scmp.ne.s32.totalorder %s131, %s132
    %p144 = scmp.eq.s32.totalorder %s24, 1
    %p145 = por %p143, %p144
    %p147 = scmp.ne.s32.totalorder %s132, %s146
    %p148 = scmp.eq.s32.totalorder %s24, 0
    %p149 = por %p147, %p148
    %s151 = sadd.s32 %s150, 1
    %p154 = scmp.eq.s32.totalorder %s18, 1
    %p155 = scmp.ne.s32.totalorder %s150, %s152
    %p156 = scmp.eq.s32.totalorder %s18, 0
    %p157 = por %p155, %p156
    %p158 = scmp.ne.s32.totalorder %s150, %s152
    %p159 = scmp.eq.s32.totalorder %s23, 1
    %p160 = por %p158, %p159
    %p161 = scmp.ne.s32.totalorder %s152, %s153
    %p162 = scmp.eq.s32.totalorder %s23, 0
    %p163 = por %p161, %p162
    %p164 = scmp.ne.s32.totalorder %s152, %s153
    %p165 = scmp.eq.s32.totalorder %s24, 1
    %p166 = por %p164, %p165
    %p168 = scmp.ne.s32.totalorder %s153, %s167
    %p169 = scmp.eq.s32.totalorder %s24, 0
    %p170 = por %p168, %p169
    %s172 = sadd.s32 %s171, 1
    %p175 = scmp.eq.s32.totalorder %s18, 1
    %p176 = scmp.ne.s32.totalorder %s171, %s173
    %p177 = scmp.eq.s32.totalorder %s18, 0
    %p178 = por %p176, %p177
    %p179 = scmp.ne.s32.totalorder %s171, %s173
    %p180 = scmp.eq.s32.totalorder %s23, 1
    %p181 = por %p179, %p180
    %p182 = scmp.ne.s32.totalorder %s173, %s174
    %p183 = scmp.eq.s32.totalorder %s23, 0
    %p184 = por %p182, %p183
    %p185 = scmp.ne.s32.totalorder %s173, %s174
    %p186 = scmp.eq.s32.totalorder %s24, 1
    %p187 = por %p185, %p186
    %p189 = scmp.ne.s32.totalorder %s174, %s188
    %p190 = scmp.eq.s32.totalorder %s24, 0
    %p191 = por %p189, %p190
    %s193 = sadd.s32 %s192, 1
    %p196 = scmp.eq.s32.totalorder %s18, 1
    %p197 = scmp.ne.s32.totalorder %s192, %s194
    %p198 = scmp.eq.s32.totalorder %s18, 0
    %p199 = por %p197, %p198
    %p200 = scmp.ne.s32.totalorder %s192, %s194
    %p201 = scmp.eq.s32.totalorder %s23, 1
    %p202 = por %p200, %p201
    %p203 = scmp.ne.s32.totalorder %s194, %s195
    %p204 = scmp.eq.s32.totalorder %s23, 0
    %p205 = por %p203, %p204
    %p206 = scmp.ne.s32.totalorder %s194, %s195
    %p207 = scmp.eq.s32.totalorder %s24, 1
    %p208 = por %p206, %p207
    %p210 = scmp.ne.s32.totalorder %s195, %s209
    %p211 = scmp.eq.s32.totalorder %s24, 0
    %p212 = por %p210, %p211
    %s214 = sadd.s32 %s213, 1
    %p217 = scmp.eq.s32.totalorder %s18, 1
    %p218 = scmp.ne.s32.totalorder %s213, %s215
    %p219 = scmp.eq.s32.totalorder %s18, 0
    %p220 = por %p218, %p219
    %p221 = scmp.ne.s32.totalorder %s213, %s215
    %p222 = scmp.eq.s32.totalorder %s23, 1
    %p223 = por %p221, %p222
    %p224 = scmp.ne.s32.totalorder %s215, %s216
    %p225 = scmp.eq.s32.totalorder %s23, 0
    %p226 = por %p224, %p225
    %p227 = scmp.ne.s32.totalorder %s215, %s216
    %p228 = scmp.eq.s32.totalorder %s24, 1
    %p229 = por %p227, %p228
    %p231 = scmp.ne.s32.totalorder %s216, %s230
    %p232 = scmp.eq.s32.totalorder %s24, 0
    %p233 = por %p231, %p232
    %s234 = ssub.s32 %s25, %s37
    %s235 = ssub.s32 %s26, %s33
    %s236 = sor.u32 %s234, %s235
    %p237 = scmp.eq.s32.totalorder %s236, 0
    %s239 = sadd.s32 %s238, 1
    %s240 = scalar_select %p237, %s238, %s239
    %p243 = pneg %p237
    %p244 = scmp.eq.s32.totalorder %s18, 1
    %p245 = por %p243, %p244
    %p246 = scmp.ne.s32.totalorder %s238, %s241
    %p247 = scmp.eq.s32.totalorder %s18, 0
    %p248 = por %p246, %p247
    %p249 = scmp.ne.s32.totalorder %s238, %s241
    %p250 = scmp.eq.s32.totalorder %s23, 1
    %p251 = por %p249, %p250
    %p252 = scmp.ne.s32.totalorder %s241, %s242
    %p253 = scmp.eq.s32.totalorder %s23, 0
    %p254 = por %p252, %p253
    %p255 = scmp.ne.s32.totalorder %s241, %s242
    %p256 = scmp.eq.s32.totalorder %s24, 1
    %p257 = por %p255, %p256
    %p259 = scmp.ne.s32.totalorder %s242, %s258
    %p260 = scmp.eq.s32.totalorder %s24, 0
    %p261 = por %p259, %p260
    %s262 = ssub.s32 %s25, %s37
    %s263 = ssub.s32 %s26, %s33
    %s264 = sor.u32 %s262, %s263
    %p265 = scmp.eq.s32.totalorder %s264, 0
    %s267 = sadd.s32 %s266, 1
    %s268 = scalar_select %p265, %s266, %s267
    %p271 = pneg %p265
    %p272 = scmp.eq.s32.totalorder %s18, 1
    %p273 = por %p271, %p272
    %p274 = scmp.ne.s32.totalorder %s266, %s269
    %p275 = scmp.eq.s32.totalorder %s18, 0
    %p276 = por %p274, %p275
    %p277 = scmp.ne.s32.totalorder %s266, %s269
    %p278 = scmp.eq.s32.totalorder %s23, 1
    %p279 = por %p277, %p278
    %p280 = scmp.ne.s32.totalorder %s269, %s270
    %p281 = scmp.eq.s32.totalorder %s23, 0
    %p282 = por %p280, %p281
    %p283 = scmp.ne.s32.totalorder %s269, %s270
    %p284 = scmp.eq.s32.totalorder %s24, 1
    %p285 = por %p283, %p284
    %p287 = scmp.ne.s32.totalorder %s270, %s286
    %p288 = scmp.eq.s32.totalorder %s24, 0
    %p289 = por %p287, %p288
    %s290 = ssub.s32 %s25, %s37
    %s291 = ssub.s32 %s26, %s33
    %s292 = sor.u32 %s290, %s291
    %p293 = scmp.eq.s32.totalorder %s292, 0
    %s295 = sadd.s32 %s294, 1
    %s296 = scalar_select %p293, %s294, %s295
    %p299 = pneg %p293
    %p300 = scmp.eq.s32.totalorder %s18, 1
    %p301 = por %p299, %p300
    %p302 = scmp.ne.s32.totalorder %s294, %s297
    %p303 = scmp.eq.s32.totalorder %s18, 0
    %p304 = por %p302, %p303
    %p305 = scmp.ne.s32.totalorder %s294, %s297
    %p306 = scmp.eq.s32.totalorder %s23, 1
    %p307 = por %p305, %p306
    %p308 = scmp.ne.s32.totalorder %s297, %s298
    %p309 = scmp.eq.s32.totalorder %s23, 0
    %p310 = por %p308, %p309
    %p311 = scmp.ne.s32.totalorder %s297, %s298
    %p312 = scmp.eq.s32.totalorder %s24, 1
    %p313 = por %p311, %p312
    %p315 = scmp.ne.s32.totalorder %s298, %s314
    %p316 = scmp.eq.s32.totalorder %s24, 0
    %p317 = por %p315, %p316
    %p318 = scmp.le.s32.totalorder 1, %s18
    %p319 = scmp.lt.s32.totalorder %s18, 3
    %p320 = pnand %p318, %p319
    %p321 = pneg %p320
    // Predicated region
    $region9: #{aux_distribution_forward.1} parent=5 // pred_check
      _
    $region10: #{aux_distribution_forward.1} parent=5 // pred_check_branch
      %323 = sbr.rel (%p320) target = $region12
    $region11: #{aux_distribution_forward.1} parent=5 // pred_region
      %s324 = ssub.s32 %s18, 1
      // Predicated region
      $region13: #{aux_distribution_forward.1} parent=11 // pred_check
        %p325 = pneg %p79
      $region14: #{aux_distribution_forward.1} parent=11 // pred_check_branch
        %327 = sbr.rel (%p325) target = $region16
      $region15: #{aux_distribution_forward.1} parent=11 // pred_region
        _
      $region16: #{aux_distribution_forward.1} parent=11 // pred_fallthru
        _
      // Predicated region
      $region17: #{aux_distribution_forward.1} parent=11 // pred_check
        %p328 = pneg %p100
      $region18: #{aux_distribution_forward.1} parent=11 // pred_check_branch
        %330 = sbr.rel (%p328) target = $region20
      $region19: #{aux_distribution_forward.1} parent=11 // pred_region
        _
      $region20: #{aux_distribution_forward.1} parent=11 // pred_fallthru
        _
      // Predicated region
      $region21: #{aux_distribution_forward.1} parent=11 // pred_check
        %p331 = pneg %p121
      $region22: #{aux_distribution_forward.1} parent=11 // pred_check_branch
        %333 = sbr.rel (%p331) target = $region24
      $region23: #{aux_distribution_forward.1} parent=11 // pred_region
        _
      $region24: #{aux_distribution_forward.1} parent=11 // pred_fallthru
        _
      // Predicated region
      $region25: #{aux_distribution_forward.1} parent=11 // pred_check
        %p334 = pneg %p142
      $region26: #{aux_distribution_forward.1} parent=11 // pred_check_branch
        %336 = sbr.rel (%p334) target = $region28
      $region27: #{aux_distribution_forward.1} parent=11 // pred_region
        _
      $region28: #{aux_distribution_forward.1} parent=11 // pred_fallthru
        _
      // Predicated region
      $region29: #{aux_distribution_forward.1} parent=11 // pred_check
        %p337 = pneg %p163
      $region30: #{aux_distribution_forward.1} parent=11 // pred_check_branch
        %339 = sbr.rel (%p337) target = $region32
      $region31: #{aux_distribution_forward.1} parent=11 // pred_region
        _
      $region32: #{aux_distribution_forward.1} parent=11 // pred_fallthru
        _
      // Predicated region
      $region33: #{aux_distribution_forward.1} parent=11 // pred_check
        %p340 = pneg %p184
      $region34: #{aux_distribution_forward.1} parent=11 // pred_check_branch
        %342 = sbr.rel (%p340) target = $region36
      $region35: #{aux_distribution_forward.1} parent=11 // pred_region
        _
      $region36: #{aux_distribution_forward.1} parent=11 // pred_fallthru
        _
      // Predicated region
      $region37: #{aux_distribution_forward.1} parent=11 // pred_check
        %p343 = pneg %p205
      $region38: #{aux_distribution_forward.1} parent=11 // pred_check_branch
        %345 = sbr.rel (%p343) target = $region40
      $region39: #{aux_distribution_forward.1} parent=11 // pred_region
        _
      $region40: #{aux_distribution_forward.1} parent=11 // pred_fallthru
        _
      // Predicated region
      $region41: #{aux_distribution_forward.1} parent=11 // pred_check
        %p346 = pneg %p226
      $region42: #{aux_distribution_forward.1} parent=11 // pred_check_branch
        %348 = sbr.rel (%p346) target = $region44
      $region43: #{aux_distribution_forward.1} parent=11 // pred_region
        _
      $region44: #{aux_distribution_forward.1} parent=11 // pred_fallthru
        _
    $region12: #{aux_distribution_forward.1} parent=5 // pred_fallthru
      _
    %p349 = scmp.lt.s32.totalorder %s18, 2
    // Predicated region
    $region45: #{aux_distribution_forward.1} parent=5 // pred_check
      %p350 = pneg %p349
    $region46: #{aux_distribution_forward.1} parent=5 // pred_check_branch
      %352 = sbr.rel (%p350) target = $region48
    $region47: #{aux_distribution_forward.1} parent=5 // pred_region
      // Predicated region
      $region49: #{aux_distribution_forward.1} parent=47 // pred_check
        %p353 = pneg %p52
      $region50: #{aux_distribution_forward.1} parent=47 // pred_check_branch
        %355 = sbr.rel (%p353) target = $region52
      $region51: #{aux_distribution_forward.1} parent=47 // pred_region
        %s356 = smul.u32 2, %s26
        %p357 = scmp.lt.s32.totalorder %s25, 1
        %s358 = scalar_select %p357, %s25, 1
        %p359 = scmp.lt.s32.totalorder %s356, 1
        %s360 = scalar_select %p359, %s356, 1
        %s361 = smul.addr %s358, 16
        %s362 = sadd.s32 %s360, %s361
        %s363 = smul.addr %s362, 8
        %s364 = scalar_lea.vmem %s0, %s363
        %s365 = smul.u32 2, %s26
      $region52: #{aux_distribution_forward.1} parent=47 // pred_fallthru
        _
    $region48: #{aux_distribution_forward.1} parent=5 // pred_fallthru
      _
    %p366 = scmp.le.s32.totalorder 1, %s18
    %p367 = scmp.lt.s32.totalorder %s18, 3
    %p368 = pnand %p366, %p367
    %p369 = pneg %p368
    // Predicated region
    $region53: #{aux_distribution_forward.1} parent=5 // pred_check
      _
    $region54: #{aux_distribution_forward.1} parent=5 // pred_check_branch
      %371 = sbr.rel (%p368) target = $region56
    $region55: #{aux_distribution_forward.1} parent=5 // pred_region
      %s372 = ssub.s32 %s18, 1
      %s373 = smul.u32 2, %s28
      %p374 = scmp.lt.s32.totalorder %s27, 1
      %s375 = scalar_select %p374, %s27, 1
      %p376 = scmp.lt.s32.totalorder %s373, 1
      %s377 = scalar_select %p376, %s373, 1
      %s378 = smul.addr %s375, 16
      %s379 = sadd.s32 %s377, %s378
      %s380 = smul.addr %s379, 8
      %s381 = scalar_lea.vmem %s0, %s380
      %p382 = pneg %p58
      %p383 = pneg %p55
      %p384 = pneg %p79
      %p385 = pneg %p76
      %p386 = pneg %p100
      %p387 = pneg %p97
      %p388 = pneg %p121
      %p389 = pneg %p118
      %p390 = pneg %p142
      %p391 = pneg %p139
      %p392 = pneg %p163
      %p393 = pneg %p160
      %p394 = pneg %p184
      %p395 = pneg %p181
      %p396 = pneg %p205
      %p397 = pneg %p202
      %p398 = pneg %p226
      %p399 = pneg %p223
      %p400 = pneg %p254
      %p401 = pneg %p251
      %s402 = smul.u32 2, %s28
      %p403 = scmp.lt.s32.totalorder %s27, 1
      %s404 = scalar_select %p403, %s27, 1
      %p405 = scmp.lt.s32.totalorder %s402, 1
      %s406 = scalar_select %p405, %s402, 1
      %s407 = smul.addr %s404, 4
      %s408 = sadd.s32 %s406, %s407
      %s409 = smul.addr %s408, 8
      %s410 = scalar_lea.vmem %s9, %s409
      %p411 = pneg %p282
      %p412 = pneg %p279
      %s413 = smul.u32 2, %s28
      %p414 = scmp.lt.s32.totalorder %s27, 1
      %s415 = scalar_select %p414, %s27, 1
      %p416 = scmp.lt.s32.totalorder %s413, 1
      %s417 = scalar_select %p416, %s413, 1
      %s418 = smul.addr %s415, 2
      %s419 = sadd.s32 %s417, %s418
      %s420 = smul.addr %s419, 4
      %s421 = scalar_lea.vmem %s10, %s420
      %p422 = pneg %p310
      %p423 = pneg %p307
      %s424 = smul.u32 2, %s28
      %p425 = scmp.lt.s32.totalorder %s27, 1
      %s426 = scalar_select %p425, %s27, 1
      %p427 = scmp.lt.s32.totalorder %s424, 1
      %s428 = scalar_select %p427, %s424, 1
      %s429 = smul.addr %s426, 2
      %s430 = sadd.s32 %s428, %s429
      %s431 = smul.addr %s430, 4
      %s432 = scalar_lea.vmem %s11, %s431
      %s433 = smul.u32 2, %s28
      %p434 = scmp.lt.s32.totalorder %s27, 1
      %s435 = scalar_select %p434, %s27, 1
      %p436 = scmp.lt.s32.totalorder %s433, 1
      %s437 = scalar_select %p436, %s433, 1
      %s438 = smul.addr %s435, 16
      %s439 = sadd.s32 %s437, %s438
      %s440 = smul.addr %s439, 8
      %s441 = scalar_lea.vmem %s0, %s440
      %s442 = smul.u32 2, %s28
      %s443 = smul.u32 2, %s28
      %p444 = scmp.lt.s32.totalorder %s27, 1
      %s445 = scalar_select %p444, %s27, 1
      %p446 = scmp.lt.s32.totalorder %s443, 1
      %s447 = scalar_select %p446, %s443, 1
      %s448 = smul.addr %s445, 4
      %s449 = sadd.s32 %s447, %s448
      %s450 = smul.addr %s449, 8
      %s451 = scalar_lea.vmem %s9, %s450
      %s452 = smul.u32 2, %s28
      %s453 = smul.u32 2, %s28
      %p454 = scmp.lt.s32.totalorder %s27, 1
      %s455 = scalar_select %p454, %s27, 1
      %p456 = scmp.lt.s32.totalorder %s453, 1
      %s457 = scalar_select %p456, %s453, 1
      %s458 = smul.addr %s455, 2
      %s459 = sadd.s32 %s457, %s458
      %s460 = smul.addr %s459, 4
      %s461 = scalar_lea.vmem %s10, %s460
      %s462 = smul.u32 2, %s28
      %s463 = smul.u32 2, %s28
      %p464 = scmp.lt.s32.totalorder %s27, 1
      %s465 = scalar_select %p464, %s27, 1
      %p466 = scmp.lt.s32.totalorder %s463, 1
      %s467 = scalar_select %p466, %s463, 1
      %s468 = smul.addr %s465, 2
      %s469 = sadd.s32 %s467, %s468
      %s470 = smul.addr %s469, 4
      %s471 = scalar_lea.vmem %s11, %s470
      %s472 = smul.u32 2, %s28
      %v473 = vld [vmem:[%s441] sm:$0xff]
      %v474 = vld [vmem:[%s441 + $0x8] sm:$0xff]
      %v475 = vld [vmem:[%s441 + $0x10] sm:$0xff]
      %v476 = vld [vmem:[%s441 + $0x18] sm:$0xff]
      %v477 = vld [vmem:[%s441 + $0x20] sm:$0xff]
      %v478 = vld [vmem:[%s441 + $0x28] sm:$0xff]
      %v479 = vld [vmem:[%s441 + $0x30] sm:$0xff]
      %v480 = vld [vmem:[%s441 + $0x38] sm:$0xff]
      %v481 = vld [vmem:[%s441 + $0x40] sm:$0xff]
      %v482 = vld [vmem:[%s441 + $0x48] sm:$0xff]
      %v483 = vld [vmem:[%s441 + $0x50] sm:$0xff]
      %v484 = vld [vmem:[%s441 + $0x58] sm:$0xff]
      %v485 = vld [vmem:[%s441 + $0x60] sm:$0xff]
      %v486 = vld [vmem:[%s441 + $0x68] sm:$0xff]
      %v487 = vld [vmem:[%s441 + $0x70] sm:$0xff]
      %v488 = vld [vmem:[%s441 + $0x78] sm:$0xff]
      %v489 = vld [vmem:[%s1] sm:$0xff]
      %v490 = vld [vmem:[%s2] sm:$0xff]
      %492 = vset.pattern.permute.xlu0 0
      %493 = vperm.xlu0 %492, %v490
      %v494 = vpop.permute.xlu0 %493
      %vm496 = vcmask 523264
      %v498 = vsel %vm496, %v489, 0
      %500 = vmatprep.subr.mxu0 %v474
      %501 = vmatpush1.msra.mxu0 %v473
      %502 = vmatprep.subr.mxu0 %v476
      %503 = vmatpush1.msra.mxu0 %v475
      %504 = vmatprep.subr.mxu0 %v478
      %505 = vmatpush1.msra.mxu0 %v477
      %506 = vmatprep.subr.mxu0 %v480
      %507 = vmatpush1.msra.mxu0 %v479
      %508 = vmatprep.subr.mxu0 %v482
      %509 = vmatpush1.msra.mxu0 %v481
      %510 = vmatprep.subr.mxu0 %v484
      %511 = vmatpush1.msra.mxu0 %v483
      %512 = vmatprep.subr.mxu0 %v486
      %513 = vmatpush1.msra.mxu0 %v485
      %514 = vmatprep.subr.mxu0 %v488
      %515 = vmatpush1.msra.mxu0 %v487
      %516 = vmatprep.subr.mxu0 0.0
      %517 = vmatpush1.msra.mxu0 0.0
      %518 = vmatprep.subr.mxu0 0.0
      %519 = vmatpush1.msra.mxu0 0.0
      %520 = vmatprep.subr.mxu0 0.0
      %521 = vmatpush1.msra.mxu0 0.0
      %522 = vmatprep.subr.mxu0 0.0
      %523 = vmatpush1.msra.mxu0 0.0
      %524 = vmatprep.subr.mxu0 0.0
      %525 = vmatpush1.msra.mxu0 0.0
      %526 = vmatprep.subr.mxu0 0.0
      %527 = vmatpush1.msra.mxu0 0.0
      %528 = vmatprep.subr.mxu0 0.0
      %529 = vmatpush1.msra.mxu0 0.0
      %530 = vmatprep.subr.mxu0 0.0
      %531 = vmatpush1.msra.mxu0 0.0
      %532 = vmatprep.subr.mxu0 0.0
      %533 = vmatpush1.msra.mxu0 0.0
      %534 = vmatprep.subr.mxu0 0.0
      %535 = vmatpush1.msra.mxu0 0.0
      %536 = vmatprep.subr.mxu0 0.0
      %537 = vmatpush1.msra.mxu0 0.0
      %538 = vmatprep.subr.mxu0 0.0
      %539 = vmatpush1.msra.mxu0 0.0
      %540 = vmatprep.subr.mxu0 0.0
      %541 = vmatpush1.msra.mxu0 0.0
      %542 = vmatprep.subr.mxu0 0.0
      %543 = vmatpush1.msra.mxu0 0.0
      %544 = vmatprep.subr.mxu0 0.0
      %545 = vmatpush1.msra.mxu0 0.0
      %546 = vmatprep.subr.mxu0 0.0
      %547 = vmatpush1.msra.mxu0 0.0
      %548 = vmatprep.subr.mxu0 0.0
      %549 = vmatpush1.msra.mxu0 0.0
      %550 = vmatprep.subr.mxu0 0.0
      %551 = vmatpush1.msra.mxu0 0.0
      %552 = vmatprep.subr.mxu0 0.0
      %553 = vmatpush1.msra.mxu0 0.0
      %554 = vmatprep.subr.mxu0 0.0
      %555 = vmatpush1.msra.mxu0 0.0
      %556 = vmatprep.subr.mxu0 0.0
      %557 = vmatpush1.msra.mxu0 0.0
      %558 = vmatprep.subr.mxu0 0.0
      %559 = vmatpush1.msra.mxu0 0.0
      %560 = vmatprep.subr.mxu0 0.0
      %561 = vmatpush1.msra.mxu0 0.0
      %562 = vmatprep.subr.mxu0 0.0
      %563 = vmatpush1.msra.mxu0 0.0
      %564 = vmatprep.mubr.f32.mxu0 0.0
      %565 = vmatmul.mubr.f32.gmra.mrb[0].mxu0 %v498
      %v566 = vpop.f32.mrb[0].mxu0
      %v567 = vadd.f32 %v494, %v566
      %v568 = vpop.f32.mrb[0].mxu0
      %v569 = vadd.f32 %v494, %v568
      %570 = vdwg.mxu0
      %vm571 = vcmp.gt.f32.partialorder %v567, 0.0
      %vm572 = vcmp.gt.f32.partialorder %v569, 0.0
      %v573 = vmul.f32 %v567, 0.2
      %v574 = vmul.f32 %v569, 0.2
      %v575 = vsel %vm571, %v567, %v573
      %v576 = vsel %vm572, %v569, %v574
      %v577 = vld [vmem:[%s3] sm:$0xff]
      %v578 = vld [vmem:[%s3 + $0x8] sm:$0x3]
      %v579 = vld [vmem:[%s4] sm:$0xff]
      %v580 = vld [vmem:[%s4 + $0x8] sm:$0x3]
      %582 = vset.pattern.permute.xlu0 0
      %583 = vperm.xlu0 %582, %v579
      %v584 = vpop.permute.xlu0 %583
      %587 = vset.pattern.permute.xlu0 0
      %588 = vperm.xlu0 %587, %v580
      %v589 = vpop.permute.xlu0 %588
      %vm591 = vcmask 64512
      %v593 = vsel %vm591, %v577, 0
      %v596 = vsel %vm591, %v578, 0
      %598 = vmatprep.subr.mxu0 %v576
      %599 = vmatpush1.msra.mxu0 %v575
      %600 = vmatprep.subr.mxu0 0.0
      %601 = vmatpush1.msra.mxu0 0.0
      %602 = vmatprep.subr.mxu0 0.0
      %603 = vmatpush1.msra.mxu0 0.0
      %604 = vmatprep.subr.mxu0 0.0
      %605 = vmatpush1.msra.mxu0 0.0
      %606 = vmatprep.subr.mxu0 0.0
      %607 = vmatpush1.msra.mxu0 0.0
      %608 = vmatprep.subr.mxu0 0.0
      %609 = vmatpush1.msra.mxu0 0.0
      %610 = vmatprep.subr.mxu0 0.0
      %611 = vmatpush1.msra.mxu0 0.0
      %612 = vmatprep.subr.mxu0 0.0
      %613 = vmatpush1.msra.mxu0 0.0
      %614 = vmatprep.subr.mxu0 0.0
      %615 = vmatpush1.msra.mxu0 0.0
      %616 = vmatprep.subr.mxu0 0.0
      %617 = vmatpush1.msra.mxu0 0.0
      %618 = vmatprep.subr.mxu0 0.0
      %619 = vmatpush1.msra.mxu0 0.0
      %620 = vmatprep.subr.mxu0 0.0
      %621 = vmatpush1.msra.mxu0 0.0
      %622 = vmatprep.subr.mxu0 0.0
      %623 = vmatpush1.msra.mxu0 0.0
      %624 = vmatprep.subr.mxu0 0.0
      %625 = vmatpush1.msra.mxu0 0.0
      %626 = vmatprep.subr.mxu0 0.0
      %627 = vmatpush1.msra.mxu0 0.0
      %628 = vmatprep.subr.mxu0 0.0
      %629 = vmatpush1.msra.mxu0 0.0
      %630 = vmatprep.subr.mxu0 0.0
      %631 = vmatpush1.msra.mxu0 0.0
      %632 = vmatprep.subr.mxu0 0.0
      %633 = vmatpush1.msra.mxu0 0.0
      %634 = vmatprep.subr.mxu0 0.0
      %635 = vmatpush1.msra.mxu0 0.0
      %636 = vmatprep.subr.mxu0 0.0
      %637 = vmatpush1.msra.mxu0 0.0
      %638 = vmatprep.subr.mxu0 0.0
      %639 = vmatpush1.msra.mxu0 0.0
      %640 = vmatprep.subr.mxu0 0.0
      %641 = vmatpush1.msra.mxu0 0.0
      %642 = vmatprep.subr.mxu0 0.0
      %643 = vmatpush1.msra.mxu0 0.0
      %644 = vmatprep.subr.mxu0 0.0
      %645 = vmatpush1.msra.mxu0 0.0
      %646 = vmatprep.subr.mxu0 0.0
      %647 = vmatpush1.msra.mxu0 0.0
      %648 = vmatprep.subr.mxu0 0.0
      %649 = vmatpush1.msra.mxu0 0.0
      %650 = vmatprep.subr.mxu0 0.0
      %651 = vmatpush1.msra.mxu0 0.0
      %652 = vmatprep.subr.mxu0 0.0
      %653 = vmatpush1.msra.mxu0 0.0
      %654 = vmatprep.subr.mxu0 0.0
      %655 = vmatpush1.msra.mxu0 0.0
      %656 = vmatprep.subr.mxu0 0.0
      %657 = vmatpush1.msra.mxu0 0.0
      %658 = vmatprep.subr.mxu0 0.0
      %659 = vmatpush1.msra.mxu0 0.0
      %660 = vmatprep.subr.mxu0 0.0
      %661 = vmatpush1.msra.mxu0 0.0
      %662 = vmatprep.mubr.f32.mxu0 0.0
      %663 = vmatmul.mubr.f32.gmra.mrb[0].mxu0 %v593
      %v664 = vpop.f32.mrb[0].mxu0
      %v665 = vadd.f32 %v584, %v664
      %v666 = vpop.f32.mrb[0].mxu0
      %v667 = vadd.f32 %v584, %v666
      %668 = vmatprep.mubr.f32.mxu0 0.0
      %669 = vmatmul.mubr.f32.gmra.mrb[0].mxu0 %v596
      %v670 = vpop.f32.mrb[0].mxu0
      %v671 = vadd.f32 %v589, %v670
      %v672 = vpop.f32.mrb[0].mxu0
      %v673 = vadd.f32 %v589, %v672
      %674 = vdwg.mxu0
      %675 = vst [vmem:[%s451] sm:$0xff] %v665
      %676 = vst [vmem:[%s451 + $0x8] sm:$0xff] %v667
      %677 = vst [vmem:[%s451 + $0x10] sm:$0x3] %v671
      %678 = vst [vmem:[%s451 + $0x18] sm:$0x3] %v673
      %v679 = vld [vmem:[%s5] sm:$0xf]
      %v680 = vld [vmem:[%s6] sm:$0xf]
      %682 = vset.pattern.permute.xlu0 0
      %683 = vperm.xlu0 %682, %v680
      %v684 = vpop.permute.xlu0 %683
      %v687 = vsel %vm591, %v679, 0
      %689 = vmatprep.subr.mxu0 %v576
      %690 = vmatpush1.msra.mxu0 %v575
      %691 = vmatprep.subr.mxu0 0.0
      %692 = vmatpush1.msra.mxu0 0.0
      %693 = vmatprep.subr.mxu0 0.0
      %694 = vmatpush1.msra.mxu0 0.0
      %695 = vmatprep.subr.mxu0 0.0
      %696 = vmatpush1.msra.mxu0 0.0
      %697 = vmatprep.subr.mxu0 0.0
      %698 = vmatpush1.msra.mxu0 0.0
      %699 = vmatprep.subr.mxu0 0.0
      %700 = vmatpush1.msra.mxu0 0.0
      %701 = vmatprep.subr.mxu0 0.0
      %702 = vmatpush1.msra.mxu0 0.0
      %703 = vmatprep.subr.mxu0 0.0
      %704 = vmatpush1.msra.mxu0 0.0
      %705 = vmatprep.subr.mxu0 0.0
      %706 = vmatpush1.msra.mxu0 0.0
      %707 = vmatprep.subr.mxu0 0.0
      %708 = vmatpush1.msra.mxu0 0.0
      %709 = vmatprep.subr.mxu0 0.0
      %710 = vmatpush1.msra.mxu0 0.0
      %711 = vmatprep.subr.mxu0 0.0
      %712 = vmatpush1.msra.mxu0 0.0
      %713 = vmatprep.subr.mxu0 0.0
      %714 = vmatpush1.msra.mxu0 0.0
      %715 = vmatprep.subr.mxu0 0.0
      %716 = vmatpush1.msra.mxu0 0.0
      %717 = vmatprep.subr.mxu0 0.0
      %718 = vmatpush1.msra.mxu0 0.0
      %719 = vmatprep.subr.mxu0 0.0
      %720 = vmatpush1.msra.mxu0 0.0
      %721 = vmatprep.subr.mxu0 0.0
      %722 = vmatpush1.msra.mxu0 0.0
      %723 = vmatprep.subr.mxu0 0.0
      %724 = vmatpush1.msra.mxu0 0.0
      %725 = vmatprep.subr.mxu0 0.0
      %726 = vmatpush1.msra.mxu0 0.0
      %727 = vmatprep.subr.mxu0 0.0
      %728 = vmatpush1.msra.mxu0 0.0
      %729 = vmatprep.subr.mxu0 0.0
      %730 = vmatpush1.msra.mxu0 0.0
      %731 = vmatprep.subr.mxu0 0.0
      %732 = vmatpush1.msra.mxu0 0.0
      %733 = vmatprep.subr.mxu0 0.0
      %734 = vmatpush1.msra.mxu0 0.0
      %735 = vmatprep.subr.mxu0 0.0
      %736 = vmatpush1.msra.mxu0 0.0
      %737 = vmatprep.subr.mxu0 0.0
      %738 = vmatpush1.msra.mxu0 0.0
      %739 = vmatprep.subr.mxu0 0.0
      %740 = vmatpush1.msra.mxu0 0.0
      %741 = vmatprep.subr.mxu0 0.0
      %742 = vmatpush1.msra.mxu0 0.0
      %743 = vmatprep.subr.mxu0 0.0
      %744 = vmatpush1.msra.mxu0 0.0
      %745 = vmatprep.subr.mxu0 0.0
      %746 = vmatpush1.msra.mxu0 0.0
      %747 = vmatprep.subr.mxu0 0.0
      %748 = vmatpush1.msra.mxu0 0.0
      %749 = vmatprep.subr.mxu0 0.0
      %750 = vmatpush1.msra.mxu0 0.0
      %751 = vmatprep.subr.mxu0 0.0
      %752 = vmatpush1.msra.mxu0 0.0
      %753 = vmatprep.mubr.f32.mxu0 0.0
      %754 = vmatmul.mubr.f32.gmra.mrb[0].mxu0 %v687
      %v755 = vpop.f32.mrb[0].mxu0
      %v756 = vadd.f32 %v684, %v755
      %v757 = vpop.f32.mrb[0].mxu0
      %v758 = vadd.f32 %v684, %v757
      %759 = vdwg.mxu0
      %v762 = vcombine.low %v756, %v758
      %764 = vst [vmem:[%s461] sm:$0xff] %v762
      %v765 = vld [vmem:[%s7] sm:$0xf]
      %v766 = vld [vmem:[%s8] sm:$0xf]
      %768 = vset.pattern.permute.xlu0 0
      %769 = vperm.xlu0 %768, %v766
      %v770 = vpop.permute.xlu0 %769
      %v773 = vsel %vm591, %v765, 0
      %775 = vmatprep.subr.mxu0 %v576
      %776 = vmatpush1.msra.mxu0 %v575
      %777 = vmatprep.subr.mxu0 0.0
      %778 = vmatpush1.msra.mxu0 0.0
      %779 = vmatprep.subr.mxu0 0.0
      %780 = vmatpush1.msra.mxu0 0.0
      %781 = vmatprep.subr.mxu0 0.0
      %782 = vmatpush1.msra.mxu0 0.0
      %783 = vmatprep.subr.mxu0 0.0
      %784 = vmatpush1.msra.mxu0 0.0
      %785 = vmatprep.subr.mxu0 0.0
      %786 = vmatpush1.msra.mxu0 0.0
      %787 = vmatprep.subr.mxu0 0.0
      %788 = vmatpush1.msra.mxu0 0.0
      %789 = vmatprep.subr.mxu0 0.0
      %790 = vmatpush1.msra.mxu0 0.0
      %791 = vmatprep.subr.mxu0 0.0
      %792 = vmatpush1.msra.mxu0 0.0
      %793 = vmatprep.subr.mxu0 0.0
      %794 = vmatpush1.msra.mxu0 0.0
      %795 = vmatprep.subr.mxu0 0.0
      %796 = vmatpush1.msra.mxu0 0.0
      %797 = vmatprep.subr.mxu0 0.0
      %798 = vmatpush1.msra.mxu0 0.0
      %799 = vmatprep.subr.mxu0 0.0
      %800 = vmatpush1.msra.mxu0 0.0
      %801 = vmatprep.subr.mxu0 0.0
      %802 = vmatpush1.msra.mxu0 0.0
      %803 = vmatprep.subr.mxu0 0.0
      %804 = vmatpush1.msra.mxu0 0.0
      %805 = vmatprep.subr.mxu0 0.0
      %806 = vmatpush1.msra.mxu0 0.0
      %807 = vmatprep.subr.mxu0 0.0
      %808 = vmatpush1.msra.mxu0 0.0
      %809 = vmatprep.subr.mxu0 0.0
      %810 = vmatpush1.msra.mxu0 0.0
      %811 = vmatprep.subr.mxu0 0.0
      %812 = vmatpush1.msra.mxu0 0.0
      %813 = vmatprep.subr.mxu0 0.0
      %814 = vmatpush1.msra.mxu0 0.0
      %815 = vmatprep.subr.mxu0 0.0
      %816 = vmatpush1.msra.mxu0 0.0
      %817 = vmatprep.subr.mxu0 0.0
      %818 = vmatpush1.msra.mxu0 0.0
      %819 = vmatprep.subr.mxu0 0.0
      %820 = vmatpush1.msra.mxu0 0.0
      %821 = vmatprep.subr.mxu0 0.0
      %822 = vmatpush1.msra.mxu0 0.0
      %823 = vmatprep.subr.mxu0 0.0
      %824 = vmatpush1.msra.mxu0 0.0
      %825 = vmatprep.subr.mxu0 0.0
      %826 = vmatpush1.msra.mxu0 0.0
      %827 = vmatprep.subr.mxu0 0.0
      %828 = vmatpush1.msra.mxu0 0.0
      %829 = vmatprep.subr.mxu0 0.0
      %830 = vmatpush1.msra.mxu0 0.0
      %831 = vmatprep.subr.mxu0 0.0
      %832 = vmatpush1.msra.mxu0 0.0
      %833 = vmatprep.subr.mxu0 0.0
      %834 = vmatpush1.msra.mxu0 0.0
      %835 = vmatprep.subr.mxu0 0.0
      %836 = vmatpush1.msra.mxu0 0.0
      %837 = vmatprep.subr.mxu0 0.0
      %838 = vmatpush1.msra.mxu0 0.0
      %839 = vmatprep.mubr.f32.mxu0 0.0
      %840 = vmatmul.mubr.f32.gmra.mrb[0].mxu0 %v773
      %v841 = vpop.f32.mrb[0].mxu0
      %v842 = vadd.f32 %v770, %v841
      %v843 = vpop.f32.mrb[0].mxu0
      %v844 = vadd.f32 %v770, %v843
      %845 = vdwg.mxu0
      %v846 = vmul.f32 %v842, 1.442695
      %v847 = vpow.pop %v846
      %v848 = vmul.f32 %v844, 1.442695
      %v849 = vpow.pop %v848
      %v852 = vcombine.low %v847, %v849
      %854 = vst [vmem:[%s471] sm:$0xff] %v852
      %s855 = smul.u32 2, %s28
      %p856 = scmp.lt.s32.totalorder %s27, 1
      %s857 = scalar_select %p856, %s27, 1
      %p858 = scmp.lt.s32.totalorder %s855, 1
      %s859 = scalar_select %p858, %s855, 1
      %s860 = smul.addr %s857, 4
      %s861 = sadd.s32 %s859, %s860
      %s862 = smul.addr %s861, 8
      %s863 = scalar_lea.vmem %s9, %s862
      %s864 = smul.u32 2, %s28
      %p865 = scmp.lt.s32.totalorder %s27, 1
      %s866 = scalar_select %p865, %s27, 1
      %p867 = scmp.lt.s32.totalorder %s864, 1
      %s868 = scalar_select %p867, %s864, 1
      %s869 = smul.addr %s866, 2
      %s870 = sadd.s32 %s868, %s869
      %s871 = smul.addr %s870, 4
      %s872 = scalar_lea.vmem %s10, %s871
      %s873 = smul.u32 2, %s28
      %p874 = scmp.lt.s32.totalorder %s27, 1
      %s875 = scalar_select %p874, %s27, 1
      %p876 = scmp.lt.s32.totalorder %s873, 1
      %s877 = scalar_select %p876, %s873, 1
      %s878 = smul.addr %s875, 2
      %s879 = sadd.s32 %s877, %s878
      %s880 = smul.addr %s879, 4
      %s881 = scalar_lea.vmem %s11, %s880
      // Predicated region
      $region57: #{aux_distribution_forward.1} parent=55 // pred_check
        %p882 = pneg %p251
      $region58: #{aux_distribution_forward.1} parent=55 // pred_check_branch
        %884 = sbr.rel (%p882) target = $region60
      $region59: #{aux_distribution_forward.1} parent=55 // pred_region
        %s885 = smul.u32 2, %s28
      $region60: #{aux_distribution_forward.1} parent=55 // pred_fallthru
        _
      // Predicated region
      $region61: #{aux_distribution_forward.1} parent=55 // pred_check
        %p886 = pneg %p279
      $region62: #{aux_distribution_forward.1} parent=55 // pred_check_branch
        %888 = sbr.rel (%p886) target = $region64
      $region63: #{aux_distribution_forward.1} parent=55 // pred_region
        %s889 = smul.u32 2, %s28
      $region64: #{aux_distribution_forward.1} parent=55 // pred_fallthru
        _
      // Predicated region
      $region65: #{aux_distribution_forward.1} parent=55 // pred_check
        %p890 = pneg %p307
      $region66: #{aux_distribution_forward.1} parent=55 // pred_check_branch
        %892 = sbr.rel (%p890) target = $region68
      $region67: #{aux_distribution_forward.1} parent=55 // pred_region
        %s893 = smul.u32 2, %s28
      $region68: #{aux_distribution_forward.1} parent=55 // pred_fallthru
        _
    $region56: #{aux_distribution_forward.1} parent=5 // pred_fallthru
      _
    %p894 = scmp.le.s32.totalorder 2, %s18
    // Predicated region
    $region69: #{aux_distribution_forward.1} parent=5 // pred_check
      %p895 = pneg %p894
    $region70: #{aux_distribution_forward.1} parent=5 // pred_check_branch
      %897 = sbr.rel (%p895) target = $region72
    $region71: #{aux_distribution_forward.1} parent=5 // pred_region
      %s898 = ssub.s32 %s18, 2
      // Predicated region
      $region73: #{aux_distribution_forward.1} parent=71 // pred_check
        %p899 = pneg %p257
      $region74: #{aux_distribution_forward.1} parent=71 // pred_check_branch
        %901 = sbr.rel (%p899) target = $region76
      $region75: #{aux_distribution_forward.1} parent=71 // pred_region
        %s902 = smul.u32 2, %s30
        %p903 = scmp.lt.s32.totalorder %s29, 1
        %s904 = scalar_select %p903, %s29, 1
        %p905 = scmp.lt.s32.totalorder %s902, 1
        %s906 = scalar_select %p905, %s902, 1
        %s907 = smul.addr %s904, 4
        %s908 = sadd.s32 %s906, %s907
        %s909 = smul.addr %s908, 8
        %s910 = scalar_lea.vmem %s9, %s909
      $region76: #{aux_distribution_forward.1} parent=71 // pred_fallthru
        _
      // Predicated region
      $region77: #{aux_distribution_forward.1} parent=71 // pred_check
        %p911 = pneg %p285
      $region78: #{aux_distribution_forward.1} parent=71 // pred_check_branch
        %913 = sbr.rel (%p911) target = $region80
      $region79: #{aux_distribution_forward.1} parent=71 // pred_region
        %s914 = smul.u32 2, %s30
        %p915 = scmp.lt.s32.totalorder %s29, 1
        %s916 = scalar_select %p915, %s29, 1
        %p917 = scmp.lt.s32.totalorder %s914, 1
        %s918 = scalar_select %p917, %s914, 1
        %s919 = smul.addr %s916, 2
        %s920 = sadd.s32 %s918, %s919
        %s921 = smul.addr %s920, 4
        %s922 = scalar_lea.vmem %s10, %s921
      $region80: #{aux_distribution_forward.1} parent=71 // pred_fallthru
        _
      // Predicated region
      $region81: #{aux_distribution_forward.1} parent=71 // pred_check
        %p923 = pneg %p313
      $region82: #{aux_distribution_forward.1} parent=71 // pred_check_branch
        %925 = sbr.rel (%p923) target = $region84
      $region83: #{aux_distribution_forward.1} parent=71 // pred_region
        %s926 = smul.u32 2, %s30
        %p927 = scmp.lt.s32.totalorder %s29, 1
        %s928 = scalar_select %p927, %s29, 1
        %p929 = scmp.lt.s32.totalorder %s926, 1
        %s930 = scalar_select %p929, %s926, 1
        %s931 = smul.addr %s928, 2
        %s932 = sadd.s32 %s930, %s931
        %s933 = smul.addr %s932, 4
        %s934 = scalar_lea.vmem %s11, %s933
      $region84: #{aux_distribution_forward.1} parent=71 // pred_fallthru
        _
    $region72: #{aux_distribution_forward.1} parent=5 // pred_fallthru
      _
  $region6: #{aux_distribution_forward.1} parent=0 // loop_footer
    %s22 = sadd.s32 1, %s18
  $region7: #{aux_distribution_forward.1} parent=0 // loop_footer_branch
    %17 = sbr.rel target = $region3
  $region8: #{aux_distribution_forward.1} parent=0 // loop_exit
    _

</llo_original>
